<compile_context>
chip_gen: v5e
topology: v5e:2x2
jax: 0.10.0
libtpu: 0.0.40
codegen_flags: <defaults>
</compile_context>

<pallas_src>
import jax
import jax.numpy as jnp
from jax.experimental import pallas as pl
from jax.experimental.pallas import tpu as pltpu


def _pool_kernel(cls_ref, img_ref, wcls_ref, bcls_ref, g_ref, bfus_ref, out_ref):
    # cls_ref : (TB, 1, C)            cls tokens of this batch block
    # img_ref : (TB, 2*Hq, Hq, 2C)    lane-dense space-to-depth padded token image:
    #                                 [b, rp*Hq + rq, cq, cp*C + c] = xpad[b, 2rq+rp, 2cq+cp, c]
    # wcls    : (C, C2),  bcls: (1, C2)
    # g_ref   : (6, 2C, C2)           folded depthwise+pointwise weights,
    #                                 index 2*ki   -> taps (ki, kj=0|1)  (cols [0,Wo))
    #                                 index 2*ki+1 -> tap  (ki, kj=2) | zeros (cols [1,Wo+1))
    # bfus    : (1, C2)               = bdw @ wpw + bpw   (both conv biases folded)
    # out_ref : (TB, 1 + Ho*Wo, C2)   row 0 = cls, rows 1.. = tokens ('b n c')
    f32 = jnp.float32
    TB, _, C = cls_ref.shape
    Hq = img_ref.shape[2]
    Ho = Wo = Hq - 1
    HW = Ho * Wo
    C2 = out_ref.shape[2]
    M = TB * HW
    K = 2 * C

    # ---- cls Linear: (TB, C) @ (C, C2) + bias (MXU, tiny M) ----
    cls_out = (jnp.dot(cls_ref[:, 0, :].astype(f32), wcls_ref[...].astype(f32),
                       preferred_element_type=f32)
               + bcls_ref[...].astype(f32))                                # (TB, C2)

    # ---- fused depthwise(3x3, stride2, ch-mult 2) + pointwise(1x1) ----
    # out_tok = sum over 3 row parities of two K=2C matmuls (column windows 0 and 1).
    tok = None
    for ki in range(3):
        rbase = (ki % 2) * Hq + (ki // 2)           # row-parity block + row offset
        rows = slice(rbase, rbase + Ho)
        slab_a = img_ref[:, rows, 0:Wo, :].astype(f32).reshape(M, K)       # taps (ki,0|1)
        slab_b = img_ref[:, rows, 1:1 + Wo, :].astype(f32).reshape(M, K)   # tap  (ki,2)
        contrib = (jnp.dot(slab_a, g_ref[2 * ki].astype(f32),
                           preferred_element_type=f32)
                   + jnp.dot(slab_b, g_ref[2 * ki + 1].astype(f32),
                             preferred_element_type=f32))
        tok = contrib if tok is None else tok + contrib
    tok = tok + bfus_ref[...].astype(f32)                                  # (M, C2)

    # ---- single fused output store (cls row + token rows) ----
    out = jnp.concatenate([cls_out[:, None, :], tok.reshape(TB, HW, C2)], axis=1)
    out_ref[...] = out.astype(out_ref.dtype)


def _pick_tb(B, HW):
    """Batch rows per grid step.

    Keep >= 4 grid steps (>= 2 per TensorCore on v7x, enough steps to pipeline on
    v5e/v6e) while growing M = TB*HW toward MXU-friendly sizes (cap ~1024)."""
    best = 1
    for tb in range(1, B + 1):
        if B % tb:
            continue
        if (B // tb) >= 4 and tb * HW <= 1024:
            best = tb
    return best


def _fold_weights(wdw, bdw, wpw, bpw, dim):
    """Fold depthwise (ch-mult 2) taps and both biases into the pointwise weights.

    Returns g_all (6, 2C, C2) f32 and b_fused (1, C2) f32 (kept in f32 on purpose)."""
    C, C2 = dim, 2 * dim
    f32 = jnp.float32
    wdw_t = wdw[:, 0, :].astype(f32)          # (9, C2): tap-major, output channel last
    wpw_f = wpw.astype(f32)                   # (C2, C2): right-multiply convention

    def g(t):                                  # (C, C2) — tap t folded through pointwise
        return (wdw_t[t, 0::2][:, None] * wpw_f[0::2, :]
                + wdw_t[t, 1::2][:, None] * wpw_f[1::2, :])

    zeros = jnp.zeros((C, C2), f32)
    blocks = []
    for ki in range(3):
        blocks.append(jnp.concatenate([g(3 * ki + 0), g(3 * ki + 1)], axis=0))  # kj=0 | kj=1
        blocks.append(jnp.concatenate([g(3 * ki + 2), zeros], axis=0))          # kj=2 | pad
    g_all = jnp.stack(blocks, axis=0)                                            # (6, 2C, C2)
    b_fused = bdw.astype(f32) @ wpw_f + bpw.astype(f32)                          # (1, C2)
    return g_all, b_fused


def pool_forward(x, params, img_size, dim, storage_dtype=None):
    """x: (B, 1 + img_size**2, dim)  ->  (B, 1 + (img_size//2)**2, 2*dim)."""
    wcls, bcls, wdw, bdw, wpw, bpw = params
    B, N, C = x.shape
    assert C == dim and N == 1 + img_size * img_size
    assert img_size % 2 == 0
    C2 = 2 * dim
    H = W = img_size
    Ho = Wo = img_size // 2
    HW = Ho * Wo
    Hq = Ho + 1                      # stride-2 grid of the (H+2)-padded image
    sdt = x.dtype if storage_dtype is None else storage_dtype

    cls_tok = x[:, :1, :]                                     # (B, 1, C)
    tokens = x[:, 1:, :].reshape(B, H, W, C)                  # 'b (h w) c' -> NHWC
    xpad = jnp.pad(tokens, ((0, 0), (1, 1), (1, 1), (0, 0)))  # (B, H+2, W+2, C)

    # Lane-dense space-to-depth: row parity -> dim 1 blocks, column parity -> lane
    # halves, so every 3x3/stride-2 tap is a contiguous window with a 2C=lane-dense
    # last dim inside the kernel.
    s2 = (xpad.reshape(B, Hq, 2, Hq, 2, C)
              .transpose(0, 2, 1, 3, 4, 5)                    # (B, rp, rq, cq, cp, C)
              .reshape(B, 2 * Hq, Hq, 2 * C)).astype(sdt)
    # TODO(synk): eliminate this pad+s2d pre-pass (fold into producer or extract taps
    # in-kernel from raw tokens) — it is ~half of the remaining end-to-end HBM bytes.

    g_all, b_fused = _fold_weights(wdw, bdw, wpw, bpw, dim)

    TB = _pick_tb(B, HW)

    out = pl.pallas_call(
        _pool_kernel,
        out_shape=jax.ShapeDtypeStruct((B, 1 + HW, C2), x.dtype),
        grid_spec=pltpu.PrefetchScalarGridSpec(
            num_scalar_prefetch=0,
            grid=(B // TB,),
            in_specs=[
                pl.BlockSpec((TB, 1, C), lambda b: (b, 0, 0)),
                pl.BlockSpec((TB, 2 * Hq, Hq, 2 * C), lambda b: (b, 0, 0, 0)),
                pl.BlockSpec((C, C2), lambda b: (0, 0)),
                pl.BlockSpec((1, C2), lambda b: (0, 0)),
                pl.BlockSpec((6, 2 * C, C2), lambda b: (0, 0, 0)),
                pl.BlockSpec((1, C2), lambda b: (0, 0)),
            ],
            out_specs=pl.BlockSpec((TB, 1 + HW, C2), lambda b: (b, 0, 0)),
        ),
        compiler_params=pltpu.CompilerParams(
            dimension_semantics=("parallel",),
            vmem_limit_bytes=32 * 1024 * 1024),   # explicit: > v5e 16MiB default, < v7x 64MiB
    )(cls_tok, s2, wcls, bcls, g_all, b_fused)
    return out


def pool_reference(x, params, img_size, dim):
    """Plain-JAX reference mirroring the PyTorch module (NCHW convs)."""
    wcls, bcls, wdw, bdw, wpw, bpw = params
    B, N, C = x.shape
    C2 = 2 * dim
    H = W = img_size
    Ho = H // 2

    cls_out = x[:, :1, :] @ wcls + bcls                       # (B, 1, C2)

    toks = x[:, 1:, :].reshape(B, H, W, C).transpose(0, 3, 1, 2)       # NCHW
    w_dw = jnp.transpose(wdw.reshape(3, 3, C2), (2, 0, 1))[:, None]    # (C2,1,3,3) OIHW
    dw = jax.lax.conv_general_dilated(
        toks, w_dw, window_strides=(2, 2), padding=((1, 1), (1, 1)),
        dimension_numbers=("NCHW", "OIHW", "NCHW"), feature_group_count=C)
    dw = dw + bdw.reshape(1, C2, 1, 1)
    w_pw = wpw.T[:, :, None, None]                                     # (C2,C2,1,1) OIHW
    pw = jax.lax.conv_general_dilated(
        dw, w_pw, window_strides=(1, 1), padding=((0, 0), (0, 0)),
        dimension_numbers=("NCHW", "OIHW", "NCHW"))
    pw = pw + bpw.reshape(1, C2, 1, 1)
    tok_out = pw.reshape(B, C2, Ho * Ho).transpose(0, 2, 1)            # b (h w) c
    return jnp.concatenate([cls_out, tok_out], axis=1)


def init_params(dim, dtype=jnp.float32):
    """Deterministic synthetic parameters (shapes per Pool.__init__)."""
    C, C2 = dim, 2 * dim
    keys = jax.random.split(jax.random.PRNGKey(0), 6)
    wcls = jax.random.normal(keys[0], (C, C2), dtype) / jnp.sqrt(jnp.asarray(C, dtype))
    bcls = 0.02 * jax.random.normal(keys[1], (1, C2), dtype)
    wdw = jax.random.normal(keys[2], (9, 1, C2), dtype) / 3.0   # depthwise 3x3 taps
    bdw = 0.02 * jax.random.normal(keys[3], (1, C2), dtype)
    wpw = jax.random.normal(keys[4], (C2, C2), dtype) / jnp.sqrt(jnp.asarray(C2, dtype))
    bpw = 0.02 * jax.random.normal(keys[5], (1, C2), dtype)
    return (wcls, bcls, wdw, bdw, wpw, bpw)


if __name__ == "__main__":
    # x: (8, 1 + 16*16, 64) = (8, 257, 64); output channels C2 = 128 (lane-dense).
    B, dim, img_size = 8, 64, 16
    params = init_params(dim)
    x = jax.random.normal(jax.random.PRNGKey(0),
                          (B, 1 + img_size * img_size, dim), jnp.float32)

    out = jax.block_until_ready(pool_forward(x, params, img_size, dim))
    ref = pool_reference(x, params, img_size, dim)

    assert out.shape == (B, 1 + (img_size // 2) ** 2, 2 * dim), out.shape
    assert jnp.allclose(out, ref, atol=2e-3, rtol=2e-3), float(jnp.max(jnp.abs(out - ref)))
    print("KERNEL_OK")
</pallas_src>

<mosaic_0001>
module attributes {stable_mosaic.version = 11 : i64} {
  func.func @_pool_kernel(%arg0: i32, %arg1: memref<2x1x64xf32, #tpu.memory_space<vmem>>, %arg2: memref<2x18x9x128xf32, #tpu.memory_space<vmem>>, %arg3: memref<64x128xf32, #tpu.memory_space<vmem>>, %arg4: memref<1x128xf32, #tpu.memory_space<vmem>>, %arg5: memref<6x128x128xf32, #tpu.memory_space<vmem>>, %arg6: memref<1x128xf32, #tpu.memory_space<vmem>>, %arg7: memref<2x65x128xf32, #tpu.memory_space<vmem>>) attributes {dimension_semantics = [#tpu.dimension_semantics<parallel>], iteration_bounds = array<i64: 4>, scalar_prefetch = 0 : i64, scratch_operands = 0 : i64, tpu.core_type = #tpu.core_type<tc>, window_params = [{transform_indices = @transform_0, window_bounds = array<i64: 2, 1, 64>}, {transform_indices = @transform_1, window_bounds = array<i64: 2, 18, 9, 128>}, {pipeline_mode = #tpu.pipeline_mode<synchronous>, transform_indices = @transform_2, window_bounds = array<i64: 64, 128>}, {pipeline_mode = #tpu.pipeline_mode<synchronous>, transform_indices = @transform_3, window_bounds = array<i64: 1, 128>}, {pipeline_mode = #tpu.pipeline_mode<synchronous>, transform_indices = @transform_4, window_bounds = array<i64: 6, 128, 128>}, {pipeline_mode = #tpu.pipeline_mode<synchronous>, transform_indices = @transform_5, window_bounds = array<i64: 1, 128>}, {transform_indices = @transform_6, window_bounds = array<i64: 2, 65, 128>}]} {
    %c0 = arith.constant 0 : index
    %c0_0 = arith.constant 0 : index
    %c0_1 = arith.constant 0 : index
    %0 = vector.load %arg1[%c0, %c0_0, %c0_1] : memref<2x1x64xf32, #tpu.memory_space<vmem>>, vector<2x1x64xf32>
    %1 = vector.shape_cast %0 : vector<2x1x64xf32> to vector<2x64xf32>
    %c0_2 = arith.constant 0 : index
    %c0_3 = arith.constant 0 : index
    %2 = vector.load %arg3[%c0_2, %c0_3] : memref<64x128xf32, #tpu.memory_space<vmem>>, vector<64x128xf32>
    %cst = arith.constant dense<0.000000e+00> : vector<2x128xf32>
    %3 = tpu.matmul %1, %2, %cst {dimension_numbers = #tpu.dot_dimension_numbers<[1], [0], [0], [1], [0, 0, 1, 1], [], []>} : vector<2x64xf32>, vector<64x128xf32>, vector<2x128xf32> -> vector<2x128xf32>
    %c0_4 = arith.constant 0 : index
    %c0_5 = arith.constant 0 : index
    %4 = vector.load %arg4[%c0_4, %c0_5] : memref<1x128xf32, #tpu.memory_space<vmem>>, vector<1x128xf32>
    %5 = vector.broadcast %4 : vector<1x128xf32> to vector<2x128xf32>
    %6 = arith.addf %3, %5 : vector<2x128xf32>
    %c0_6 = arith.constant 0 : index
    %c0_7 = arith.constant 0 : index
    %c0_8 = arith.constant 0 : index
    %c0_9 = arith.constant 0 : index
    %7 = vector.load %arg2[%c0_6, %c0_7, %c0_8, %c0_9] : memref<2x18x9x128xf32, #tpu.memory_space<vmem>>, vector<2x8x8x128xf32>
    %8 = vector.shape_cast %7 : vector<2x8x8x128xf32> to vector<128x128xf32>
    %c0_10 = arith.constant 0 : index
    %c0_11 = arith.constant 0 : index
    %c1 = arith.constant 1 : index
    %c0_12 = arith.constant 0 : index
    %9 = vector.load %arg2[%c0_10, %c0_11, %c1, %c0_12] : memref<2x18x9x128xf32, #tpu.memory_space<vmem>>, vector<2x8x8x128xf32>
    %10 = vector.shape_cast %9 : vector<2x8x8x128xf32> to vector<128x128xf32>
    %c0_13 = arith.constant 0 : index
    %c0_14 = arith.constant 0 : index
    %c0_15 = arith.constant 0 : index
    %11 = vector.load %arg5[%c0_13, %c0_14, %c0_15] : memref<6x128x128xf32, #tpu.memory_space<vmem>>, vector<1x128x128xf32>
    %12 = vector.shape_cast %11 : vector<1x128x128xf32> to vector<128x128xf32>
    %cst_16 = arith.constant dense<0.000000e+00> : vector<128x128xf32>
    %13 = tpu.matmul %8, %12, %cst_16 {dimension_numbers = #tpu.dot_dimension_numbers<[1], [0], [0], [1], [0, 0, 1, 1], [], []>} : vector<128x128xf32>, vector<128x128xf32>, vector<128x128xf32> -> vector<128x128xf32>
    %c1_17 = arith.constant 1 : index
    %c0_18 = arith.constant 0 : index
    %c0_19 = arith.constant 0 : index
    %14 = vector.load %arg5[%c1_17, %c0_18, %c0_19] : memref<6x128x128xf32, #tpu.memory_space<vmem>>, vector<1x128x128xf32>
    %15 = vector.shape_cast %14 : vector<1x128x128xf32> to vector<128x128xf32>
    %cst_20 = arith.constant dense<0.000000e+00> : vector<128x128xf32>
    %16 = tpu.matmul %10, %15, %cst_20 {dimension_numbers = #tpu.dot_dimension_numbers<[1], [0], [0], [1], [0, 0, 1, 1], [], []>} : vector<128x128xf32>, vector<128x128xf32>, vector<128x128xf32> -> vector<128x128xf32>
    %17 = arith.addf %13, %16 : vector<128x128xf32>
    %c0_21 = arith.constant 0 : index
    %c9 = arith.constant 9 : index
    %c0_22 = arith.constant 0 : index
    %c0_23 = arith.constant 0 : index
    %18 = vector.load %arg2[%c0_21, %c9, %c0_22, %c0_23] : memref<2x18x9x128xf32, #tpu.memory_space<vmem>>, vector<2x8x8x128xf32>
    %19 = vector.shape_cast %18 : vector<2x8x8x128xf32> to vector<128x128xf32>
    %c0_24 = arith.constant 0 : index
    %c9_25 = arith.constant 9 : index
    %c1_26 = arith.constant 1 : index
    %c0_27 = arith.constant 0 : index
    %20 = vector.load %arg2[%c0_24, %c9_25, %c1_26, %c0_27] : memref<2x18x9x128xf32, #tpu.memory_space<vmem>>, vector<2x8x8x128xf32>
    %21 = vector.shape_cast %20 : vector<2x8x8x128xf32> to vector<128x128xf32>
    %c2 = arith.constant 2 : index
    %c0_28 = arith.constant 0 : index
    %c0_29 = arith.constant 0 : index
    %22 = vector.load %arg5[%c2, %c0_28, %c0_29] : memref<6x128x128xf32, #tpu.memory_space<vmem>>, vector<1x128x128xf32>
    %23 = vector.shape_cast %22 : vector<1x128x128xf32> to vector<128x128xf32>
    %cst_30 = arith.constant dense<0.000000e+00> : vector<128x128xf32>
    %24 = tpu.matmul %19, %23, %cst_30 {dimension_numbers = #tpu.dot_dimension_numbers<[1], [0], [0], [1], [0, 0, 1, 1], [], []>} : vector<128x128xf32>, vector<128x128xf32>, vector<128x128xf32> -> vector<128x128xf32>
    %c3 = arith.constant 3 : index
    %c0_31 = arith.constant 0 : index
    %c0_32 = arith.constant 0 : index
    %25 = vector.load %arg5[%c3, %c0_31, %c0_32] : memref<6x128x128xf32, #tpu.memory_space<vmem>>, vector<1x128x128xf32>
    %26 = vector.shape_cast %25 : vector<1x128x128xf32> to vector<128x128xf32>
    %cst_33 = arith.constant dense<0.000000e+00> : vector<128x128xf32>
    %27 = tpu.matmul %21, %26, %cst_33 {dimension_numbers = #tpu.dot_dimension_numbers<[1], [0], [0], [1], [0, 0, 1, 1], [], []>} : vector<128x128xf32>, vector<128x128xf32>, vector<128x128xf32> -> vector<128x128xf32>
    %28 = arith.addf %24, %27 : vector<128x128xf32>
    %29 = arith.addf %17, %28 : vector<128x128xf32>
    %c0_34 = arith.constant 0 : index
    %c1_35 = arith.constant 1 : index
    %c0_36 = arith.constant 0 : index
    %c0_37 = arith.constant 0 : index
    %30 = vector.load %arg2[%c0_34, %c1_35, %c0_36, %c0_37] : memref<2x18x9x128xf32, #tpu.memory_space<vmem>>, vector<2x8x8x128xf32>
    %31 = vector.shape_cast %30 : vector<2x8x8x128xf32> to vector<128x128xf32>
    %c0_38 = arith.constant 0 : index
    %c1_39 = arith.constant 1 : index
    %c1_40 = arith.constant 1 : index
    %c0_41 = arith.constant 0 : index
    %32 = vector.load %arg2[%c0_38, %c1_39, %c1_40, %c0_41] : memref<2x18x9x128xf32, #tpu.memory_space<vmem>>, vector<2x8x8x128xf32>
    %33 = vector.shape_cast %32 : vector<2x8x8x128xf32> to vector<128x128xf32>
    %c4 = arith.constant 4 : index
    %c0_42 = arith.constant 0 : index
    %c0_43 = arith.constant 0 : index
    %34 = vector.load %arg5[%c4, %c0_42, %c0_43] : memref<6x128x128xf32, #tpu.memory_space<vmem>>, vector<1x128x128xf32>
    %35 = vector.shape_cast %34 : vector<1x128x128xf32> to vector<128x128xf32>
    %cst_44 = arith.constant dense<0.000000e+00> : vector<128x128xf32>
    %36 = tpu.matmul %31, %35, %cst_44 {dimension_numbers = #tpu.dot_dimension_numbers<[1], [0], [0], [1], [0, 0, 1, 1], [], []>} : vector<128x128xf32>, vector<128x128xf32>, vector<128x128xf32> -> vector<128x128xf32>
    %c5 = arith.constant 5 : index
    %c0_45 = arith.constant 0 : index
    %c0_46 = arith.constant 0 : index
    %37 = vector.load %arg5[%c5, %c0_45, %c0_46] : memref<6x128x128xf32, #tpu.memory_space<vmem>>, vector<1x128x128xf32>
    %38 = vector.shape_cast %37 : vector<1x128x128xf32> to vector<128x128xf32>
    %cst_47 = arith.constant dense<0.000000e+00> : vector<128x128xf32>
    %39 = tpu.matmul %33, %38, %cst_47 {dimension_numbers = #tpu.dot_dimension_numbers<[1], [0], [0], [1], [0, 0, 1, 1], [], []>} : vector<128x128xf32>, vector<128x128xf32>, vector<128x128xf32> -> vector<128x128xf32>
    %40 = arith.addf %36, %39 : vector<128x128xf32>
    %41 = arith.addf %29, %40 : vector<128x128xf32>
    %c0_48 = arith.constant 0 : index
    %c0_49 = arith.constant 0 : index
    %42 = vector.load %arg6[%c0_48, %c0_49] : memref<1x128xf32, #tpu.memory_space<vmem>>, vector<1x128xf32>
    %43 = vector.broadcast %42 : vector<1x128xf32> to vector<128x128xf32>
    %44 = arith.addf %41, %43 : vector<128x128xf32>
    %45 = vector.shape_cast %6 : vector<2x128xf32> to vector<2x1x128xf32>
    %46 = vector.shape_cast %44 : vector<128x128xf32> to vector<2x64x128xf32>
    %47 = tpu.concatenate %45, %46 in 1 : vector<2x1x128xf32>, vector<2x64x128xf32> -> vector<2x65x128xf32>
    %c0_50 = arith.constant 0 : index
    %c0_51 = arith.constant 0 : index
    %c0_52 = arith.constant 0 : index
    %48 = vector.load %arg7[%c0_50, %c0_51, %c0_52] : memref<2x65x128xf32, #tpu.memory_space<vmem>>, vector<2x65x128xf32>
    tpu.vector_store %arg7[%c0_50, %c0_51, %c0_52], %47 {strides = array<i32>} : memref<2x65x128xf32, #tpu.memory_space<vmem>>, vector<2x65x128xf32>,
    return
  }
  func.func @transform_0(%arg0: i32) -> (i32, i32, i32) {
    %c0_i32 = arith.constant 0 : i32
    %c0_i32_0 = arith.constant 0 : i32
    %c0_i32_1 = arith.constant 0 : i32
    return %arg0, %c0_i32, %c0_i32_0 : i32, i32, i32
  }
  func.func @transform_1(%arg0: i32) -> (i32, i32, i32, i32) {
    %c0_i32 = arith.constant 0 : i32
    %c0_i32_0 = arith.constant 0 : i32
    %c0_i32_1 = arith.constant 0 : i32
    %c0_i32_2 = arith.constant 0 : i32
    return %arg0, %c0_i32, %c0_i32_0, %c0_i32_1 : i32, i32, i32, i32
  }
  func.func @transform_2(%arg0: i32) -> (i32, i32) {
    %c0_i32 = arith.constant 0 : i32
    %c0_i32_0 = arith.constant 0 : i32
    %c0_i32_1 = arith.constant 0 : i32
    return %c0_i32, %c0_i32_0 : i32, i32
  }
  func.func @transform_3(%arg0: i32) -> (i32, i32) {
    %c0_i32 = arith.constant 0 : i32
    %c0_i32_0 = arith.constant 0 : i32
    %c0_i32_1 = arith.constant 0 : i32
    return %c0_i32, %c0_i32_0 : i32, i32
  }
  func.func @transform_4(%arg0: i32) -> (i32, i32, i32) {
    %c0_i32 = arith.constant 0 : i32
    %c0_i32_0 = arith.constant 0 : i32
    %c0_i32_1 = arith.constant 0 : i32
    %c0_i32_2 = arith.constant 0 : i32
    return %c0_i32, %c0_i32_0, %c0_i32_1 : i32, i32, i32
  }
  func.func @transform_5(%arg0: i32) -> (i32, i32) {
    %c0_i32 = arith.constant 0 : i32
    %c0_i32_0 = arith.constant 0 : i32
    %c0_i32_1 = arith.constant 0 : i32
    return %c0_i32, %c0_i32_0 : i32, i32
  }
  func.func @transform_6(%arg0: i32) -> (i32, i32, i32) {
    %c0_i32 = arith.constant 0 : i32
    %c0_i32_0 = arith.constant 0 : i32
    %c0_i32_1 = arith.constant 0 : i32
    return %arg0, %c0_i32, %c0_i32_0 : i32, i32, i32
  }
}

</mosaic_0001>

<llo_original>
// kernel: tpu_custom_call.1
$region0: #{tpu_custom_call.1}
  #allocation0 [shape = 'u32[]', space=smem, size = 0x4, offset = 0x4, fixed_abs, tag = 'smem constant byte address 0x4 - core index']
  #allocation1 [shape = 'u32[72,128]{1,0:T(1,128)}', space=vmem, size = 0x9000, scoped, tag = 'internal scratch']
  %s0 = inlined_call_operand.vmem [shape: f32[8,1,64], index: 0, kind: input, shape index: {}]
  %s1 = inlined_call_operand.vmem [shape: f32[8,18,9,128], index: 1, kind: input, shape index: {}]
  %s2 = inlined_call_operand.vmem [shape: f32[64,128], index: 2, kind: input, shape index: {}]
  %s3 = inlined_call_operand.vmem [shape: f32[1,128], index: 3, kind: input, shape index: {}]
  %s4 = inlined_call_operand.vmem [shape: f32[6,128,128], index: 4, kind: input, shape index: {}]
  %s5 = inlined_call_operand.vmem [shape: f32[1,128], index: 5, kind: input, shape index: {}]
  %s6 = inlined_call_operand.vmem [shape: f32[8,65,128], index: 6, kind: output, shape index: {}]
  %s7 = sld [smem:[#allocation0]]
  $region57: #{tpu_custom_call.1} parent=0
    _
  %s9 = ssub.s32 1, %s7
  %s10 = scalar_select 0, %s9, %s7
  loop: start=0, step=1, limit=6
  $region2: #{tpu_custom_call.1} parent=0 // loop_pre_header
    _
  $region3: #{tpu_custom_call.1} parent=0 // loop_header
    %s12 = sphi 0, %s16
    %p13 = scmp.ge.s32.totalorder %s12, 6
    %s22 = sphi 0, %s24
    %s25 = sphi 0, %s22
    %s26 = sphi 0, %s25
    %s42 = sphi 0, %s26
    %s48 = sphi 0, %s50
    %s51 = sphi 0, %s48
    %s52 = sphi 0, %s51
    %s68 = sphi 0, %s52
    %s72 = sphi 0, %s72
    %s74 = sphi 0, %s72
    %s75 = sphi 0, %s74
    %s89 = sphi 0, %s75
    %s93 = sphi 0, %s93
    %s95 = sphi 0, %s93
    %s96 = sphi 0, %s95
    %s110 = sphi 0, %s96
    %s114 = sphi 0, %s114
    %s116 = sphi 0, %s114
    %s117 = sphi 0, %s116
    %s131 = sphi 0, %s117
    %s135 = sphi 0, %s135
    %s137 = sphi 0, %s135
    %s138 = sphi 0, %s137
    %s152 = sphi 0, %s138
    %s158 = sphi 0, %s160
    %s161 = sphi 0, %s158
    %s162 = sphi 0, %s161
    %s178 = sphi 0, %s162
  $region4: #{tpu_custom_call.1} parent=0 // loop_header_branch
    %15 = sbr.rel (%p13) target = $region8
  $region5: #{tpu_custom_call.1} parent=0 // loop_body
    %s17 = ssub.s32 %s12, 1
    %s18 = ssub.s32 %s12, 2
    %s19 = sadd.s32 %s12, 1
    %s20 = ssub.s32 %s12, %s19
    %p21 = scmp.eq.s32.totalorder %s20, 0
    %s23 = sadd.s32 %s22, 1
    %s24 = scalar_select %p21, %s22, %s23
    %p27 = pneg %p21
    %p28 = scmp.eq.s32.totalorder %s12, 3
    %p29 = por %p27, %p28
    %p30 = scmp.ne.s32.totalorder %s22, %s25
    %p31 = scmp.eq.s32.totalorder %s12, 0
    %p32 = por %p30, %p31
    %p33 = scmp.ne.s32.totalorder %s22, %s25
    %p34 = scmp.eq.s32.totalorder %s17, 3
    %p35 = por %p33, %p34
    %p36 = scmp.ne.s32.totalorder %s25, %s26
    %p37 = scmp.eq.s32.totalorder %s17, 0
    %p38 = por %p36, %p37
    %p39 = scmp.ne.s32.totalorder %s25, %s26
    %p40 = scmp.eq.s32.totalorder %s18, 3
    %p41 = por %p39, %p40
    %p43 = scmp.ne.s32.totalorder %s26, %s42
    %p44 = scmp.eq.s32.totalorder %s18, 0
    %p45 = por %p43, %p44
    %s46 = ssub.s32 %s12, %s19
    %p47 = scmp.eq.s32.totalorder %s46, 0
    %s49 = sadd.s32 %s48, 1
    %s50 = scalar_select %p47, %s48, %s49
    %p53 = pneg %p47
    %p54 = scmp.eq.s32.totalorder %s12, 3
    %p55 = por %p53, %p54
    %p56 = scmp.ne.s32.totalorder %s48, %s51
    %p57 = scmp.eq.s32.totalorder %s12, 0
    %p58 = por %p56, %p57
    %p59 = scmp.ne.s32.totalorder %s48, %s51
    %p60 = scmp.eq.s32.totalorder %s17, 3
    %p61 = por %p59, %p60
    %p62 = scmp.ne.s32.totalorder %s51, %s52
    %p63 = scmp.eq.s32.totalorder %s17, 0
    %p64 = por %p62, %p63
    %p65 = scmp.ne.s32.totalorder %s51, %s52
    %p66 = scmp.eq.s32.totalorder %s18, 3
    %p67 = por %p65, %p66
    %p69 = scmp.ne.s32.totalorder %s52, %s68
    %p70 = scmp.eq.s32.totalorder %s18, 0
    %p71 = por %p69, %p70
    %s73 = sadd.s32 %s72, 1
    %p76 = scmp.eq.s32.totalorder %s12, 3
    %p77 = scmp.ne.s32.totalorder %s72, %s74
    %p78 = scmp.eq.s32.totalorder %s12, 0
    %p79 = por %p77, %p78
    %p80 = scmp.ne.s32.totalorder %s72, %s74
    %p81 = scmp.eq.s32.totalorder %s17, 3
    %p82 = por %p80, %p81
    %p83 = scmp.ne.s32.totalorder %s74, %s75
    %p84 = scmp.eq.s32.totalorder %s17, 0
    %p85 = por %p83, %p84
    %p86 = scmp.ne.s32.totalorder %s74, %s75
    %p87 = scmp.eq.s32.totalorder %s18, 3
    %p88 = por %p86, %p87
    %p90 = scmp.ne.s32.totalorder %s75, %s89
    %p91 = scmp.eq.s32.totalorder %s18, 0
    %p92 = por %p90, %p91
    %s94 = sadd.s32 %s93, 1
    %p97 = scmp.eq.s32.totalorder %s12, 3
    %p98 = scmp.ne.s32.totalorder %s93, %s95
    %p99 = scmp.eq.s32.totalorder %s12, 0
    %p100 = por %p98, %p99
    %p101 = scmp.ne.s32.totalorder %s93, %s95
    %p102 = scmp.eq.s32.totalorder %s17, 3
    %p103 = por %p101, %p102
    %p104 = scmp.ne.s32.totalorder %s95, %s96
    %p105 = scmp.eq.s32.totalorder %s17, 0
    %p106 = por %p104, %p105
    %p107 = scmp.ne.s32.totalorder %s95, %s96
    %p108 = scmp.eq.s32.totalorder %s18, 3
    %p109 = por %p107, %p108
    %p111 = scmp.ne.s32.totalorder %s96, %s110
    %p112 = scmp.eq.s32.totalorder %s18, 0
    %p113 = por %p111, %p112
    %s115 = sadd.s32 %s114, 1
    %p118 = scmp.eq.s32.totalorder %s12, 3
    %p119 = scmp.ne.s32.totalorder %s114, %s116
    %p120 = scmp.eq.s32.totalorder %s12, 0
    %p121 = por %p119, %p120
    %p122 = scmp.ne.s32.totalorder %s114, %s116
    %p123 = scmp.eq.s32.totalorder %s17, 3
    %p124 = por %p122, %p123
    %p125 = scmp.ne.s32.totalorder %s116, %s117
    %p126 = scmp.eq.s32.totalorder %s17, 0
    %p127 = por %p125, %p126
    %p128 = scmp.ne.s32.totalorder %s116, %s117
    %p129 = scmp.eq.s32.totalorder %s18, 3
    %p130 = por %p128, %p129
    %p132 = scmp.ne.s32.totalorder %s117, %s131
    %p133 = scmp.eq.s32.totalorder %s18, 0
    %p134 = por %p132, %p133
    %s136 = sadd.s32 %s135, 1
    %p139 = scmp.eq.s32.totalorder %s12, 3
    %p140 = scmp.ne.s32.totalorder %s135, %s137
    %p141 = scmp.eq.s32.totalorder %s12, 0
    %p142 = por %p140, %p141
    %p143 = scmp.ne.s32.totalorder %s135, %s137
    %p144 = scmp.eq.s32.totalorder %s17, 3
    %p145 = por %p143, %p144
    %p146 = scmp.ne.s32.totalorder %s137, %s138
    %p147 = scmp.eq.s32.totalorder %s17, 0
    %p148 = por %p146, %p147
    %p149 = scmp.ne.s32.totalorder %s137, %s138
    %p150 = scmp.eq.s32.totalorder %s18, 3
    %p151 = por %p149, %p150
    %p153 = scmp.ne.s32.totalorder %s138, %s152
    %p154 = scmp.eq.s32.totalorder %s18, 0
    %p155 = por %p153, %p154
    %s156 = ssub.s32 %s12, %s19
    %p157 = scmp.eq.s32.totalorder %s156, 0
    %s159 = sadd.s32 %s158, 1
    %s160 = scalar_select %p157, %s158, %s159
    %p163 = pneg %p157
    %p164 = scmp.eq.s32.totalorder %s12, 3
    %p165 = por %p163, %p164
    %p166 = scmp.ne.s32.totalorder %s158, %s161
    %p167 = scmp.eq.s32.totalorder %s12, 0
    %p168 = por %p166, %p167
    %p169 = scmp.ne.s32.totalorder %s158, %s161
    %p170 = scmp.eq.s32.totalorder %s17, 3
    %p171 = por %p169, %p170
    %p172 = scmp.ne.s32.totalorder %s161, %s162
    %p173 = scmp.eq.s32.totalorder %s17, 0
    %p174 = por %p172, %p173
    %p175 = scmp.ne.s32.totalorder %s161, %s162
    %p176 = scmp.eq.s32.totalorder %s18, 3
    %p177 = por %p175, %p176
    %p179 = scmp.ne.s32.totalorder %s162, %s178
    %p180 = scmp.eq.s32.totalorder %s18, 0
    %p181 = por %p179, %p180
    %p182 = scmp.le.s32.totalorder 1, %s12
    %p183 = scmp.lt.s32.totalorder %s12, 5
    %p184 = pnand %p182, %p183
    %p185 = pneg %p184
    // Predicated region
    $region9: #{tpu_custom_call.1} parent=5 // pred_check
      _
    $region10: #{tpu_custom_call.1} parent=5 // pred_check_branch
      %187 = sbr.rel (%p184) target = $region12
    $region11: #{tpu_custom_call.1} parent=5 // pred_region
      %s188 = ssub.s32 %s12, 1
      // Predicated region
      $region13: #{tpu_custom_call.1} parent=11 // pred_check
        %p189 = pneg %p85
      $region14: #{tpu_custom_call.1} parent=11 // pred_check_branch
        %191 = sbr.rel (%p189) target = $region16
      $region15: #{tpu_custom_call.1} parent=11 // pred_region
        _
      $region16: #{tpu_custom_call.1} parent=11 // pred_fallthru
        _
      // Predicated region
      $region17: #{tpu_custom_call.1} parent=11 // pred_check
        %p192 = pneg %p106
      $region18: #{tpu_custom_call.1} parent=11 // pred_check_branch
        %194 = sbr.rel (%p192) target = $region20
      $region19: #{tpu_custom_call.1} parent=11 // pred_region
        _
      $region20: #{tpu_custom_call.1} parent=11 // pred_fallthru
        _
      // Predicated region
      $region21: #{tpu_custom_call.1} parent=11 // pred_check
        %p195 = pneg %p127
      $region22: #{tpu_custom_call.1} parent=11 // pred_check_branch
        %197 = sbr.rel (%p195) target = $region24
      $region23: #{tpu_custom_call.1} parent=11 // pred_region
        _
      $region24: #{tpu_custom_call.1} parent=11 // pred_fallthru
        _
      // Predicated region
      $region25: #{tpu_custom_call.1} parent=11 // pred_check
        %p198 = pneg %p148
      $region26: #{tpu_custom_call.1} parent=11 // pred_check_branch
        %200 = sbr.rel (%p198) target = $region28
      $region27: #{tpu_custom_call.1} parent=11 // pred_region
        _
      $region28: #{tpu_custom_call.1} parent=11 // pred_fallthru
        _
    $region12: #{tpu_custom_call.1} parent=5 // pred_fallthru
      _
    %p201 = scmp.lt.s32.totalorder %s12, 4
    // Predicated region
    $region29: #{tpu_custom_call.1} parent=5 // pred_check
      %p202 = pneg %p201
    $region30: #{tpu_custom_call.1} parent=5 // pred_check_branch
      %204 = sbr.rel (%p202) target = $region32
    $region31: #{tpu_custom_call.1} parent=5 // pred_region
      // Predicated region
      $region33: #{tpu_custom_call.1} parent=31 // pred_check
        %p205 = pneg %p32
      $region34: #{tpu_custom_call.1} parent=31 // pred_check_branch
        %207 = sbr.rel (%p205) target = $region36
      $region35: #{tpu_custom_call.1} parent=31 // pred_region
        %s208 = smul.u32 2, %s12
        %p209 = scmp.lt.s32.totalorder %s208, 7
        %s210 = scalar_select %p209, %s208, 7
        %s211 = scalar_lea.vmem %s0, %s210
        %s212 = smul.u32 2, %s12
      $region36: #{tpu_custom_call.1} parent=31 // pred_fallthru
        _
      // Predicated region
      $region37: #{tpu_custom_call.1} parent=31 // pred_check
        %p213 = pneg %p58
      $region38: #{tpu_custom_call.1} parent=31 // pred_check_branch
        %215 = sbr.rel (%p213) target = $region40
      $region39: #{tpu_custom_call.1} parent=31 // pred_region
        %s216 = smul.u32 2, %s12
        %p217 = scmp.lt.s32.totalorder %s216, 7
        %s218 = scalar_select %p217, %s216, 7
        %s219 = smul.addr %s218, 36
        %s220 = smul.addr %s219, 8
        %s221 = scalar_lea.vmem %s1, %s220
        %s222 = smul.u32 2, %s12
      $region40: #{tpu_custom_call.1} parent=31 // pred_fallthru
        _
    $region32: #{tpu_custom_call.1} parent=5 // pred_fallthru
      _
    %p223 = scmp.le.s32.totalorder 1, %s12
    %p224 = scmp.lt.s32.totalorder %s12, 5
    %p225 = pnand %p223, %p224
    %p226 = pneg %p225
    // Predicated region
    $region41: #{tpu_custom_call.1} parent=5 // pred_check
      _
    $region42: #{tpu_custom_call.1} parent=5 // pred_check_branch
      %228 = sbr.rel (%p225) target = $region44
    $region43: #{tpu_custom_call.1} parent=5 // pred_region
      %s229 = ssub.s32 %s12, 1
      %s230 = smul.u32 2, %s17
      %p231 = scmp.lt.s32.totalorder %s230, 7
      %s232 = scalar_select %p231, %s230, 7
      %s233 = scalar_lea.vmem %s0, %s232
      %p234 = pneg %p38
      %p235 = pneg %p35
      %s236 = smul.u32 2, %s17
      %p237 = scmp.lt.s32.totalorder %s236, 7
      %s238 = scalar_select %p237, %s236, 7
      %s239 = smul.addr %s238, 36
      %s240 = smul.addr %s239, 8
      %s241 = scalar_lea.vmem %s1, %s240
      %p242 = pneg %p64
      %p243 = pneg %p61
      %p244 = pneg %p85
      %p245 = pneg %p82
      %p246 = pneg %p106
      %p247 = pneg %p103
      %p248 = pneg %p127
      %p249 = pneg %p124
      %p250 = pneg %p148
      %p251 = pneg %p145
      %p252 = pneg %p174
      %p253 = pneg %p171
      %s254 = smul.u32 2, %s17
      %p255 = scmp.lt.s32.totalorder %s254, 7
      %s256 = scalar_select %p255, %s254, 7
      %s257 = smul.addr %s256, 9
      %s258 = smul.addr %s257, 8
      %s259 = scalar_lea.vmem %s6, %s258
      %s260 = smul.u32 2, %s17
      %p261 = scmp.lt.s32.totalorder %s260, 7
      %s262 = scalar_select %p261, %s260, 7
      %s263 = scalar_lea.vmem %s0, %s262
      %s264 = smul.u32 2, %s17
      %s265 = smul.u32 2, %s17
      %p266 = scmp.lt.s32.totalorder %s265, 7
      %s267 = scalar_select %p266, %s265, 7
      %s268 = smul.addr %s267, 36
      %s269 = smul.addr %s268, 8
      %s270 = scalar_lea.vmem %s1, %s269
      %s271 = smul.u32 2, %s17
      %s272 = smul.u32 2, %s17
      %p273 = scmp.lt.s32.totalorder %s272, 7
      %s274 = scalar_select %p273, %s272, 7
      %s275 = smul.addr %s274, 9
      %s276 = smul.addr %s275, 8
      %s277 = scalar_lea.vmem %s6, %s276
      %s278 = smul.u32 2, %s17
      %v279 = vld [vmem:[%s263] sm:$0x1]
      %v280 = vld [vmem:[%s263 + $0x1] sm:$0x1]
      %v281 = vld [vmem:[%s2] sm:$0xff]
      %v282 = vld [vmem:[%s2 + $0x8] sm:$0xff]
      %v283 = vld [vmem:[%s2 + $0x10] sm:$0xff]
      %v284 = vld [vmem:[%s2 + $0x18] sm:$0xff]
      %v285 = vld [vmem:[%s2 + $0x20] sm:$0xff]
      %v286 = vld [vmem:[%s2 + $0x28] sm:$0xff]
      %v287 = vld [vmem:[%s2 + $0x30] sm:$0xff]
      %v288 = vld [vmem:[%s2 + $0x38] sm:$0xff]
      %v289 = vld [vmem:[%s3] sm:$0x1]
      %v291 = vperm.slane %v289, 0
      %295 = vst [vmem:[#allocation1] ss:$9 sm:$0xff] %v279
      %s296 = scalar_lea.vmem [#allocation1], 1
      %297 = vst [vmem:[%s296] ss:$9 sm:$0xff] %v280
      %v298 = vld [vmem:[#allocation1] sm:$0xff]
      %vm299 = vcmask 523264
      %v300 = vsel %vm299, %v298, 0
      %302 = vmatpush.msra.mxu0 0.0
      %303 = vmatpush.msra.mxu0 0.0
      %304 = vmatpush.msra.mxu0 0.0
      %305 = vmatpush.msra.mxu0 0.0
      %306 = vmatpush.msra.mxu0 0.0
      %307 = vmatpush.msra.mxu0 0.0
      %308 = vmatpush.msra.mxu0 0.0
      %309 = vmatpush.msra.mxu0 0.0
      %310 = vmatpush.msra.mxu0 %v288
      %311 = vmatpush.msra.mxu0 %v287
      %312 = vmatpush.msra.mxu0 %v286
      %313 = vmatpush.msra.mxu0 %v285
      %314 = vmatpush.msra.mxu0 %v284
      %315 = vmatpush.msra.mxu0 %v283
      %316 = vmatpush.msra.mxu0 %v282
      %317 = vmatpush.msra.mxu0 %v281
      %318 = vmatmul.f32.gmra.mxu0 %v300
      %v319 = vpop.f32.mrf.mxu0
      %v320 = vadd.f32 %v291, %v319
      %321 = vdwg.mxu0
      %v322 = vld [vmem:[%s270] sm:$0xff]
      %v323 = vld [vmem:[%s270 + $0x10] sm:$0xff]
      %v324 = vld [vmem:[%s270 + $0x20] sm:$0xff]
      %v325 = vld [vmem:[%s270 + $0x30] sm:$0xff]
      %v326 = vld [vmem:[%s270 + $0x40] sm:$0xff]
      %v327 = vld [vmem:[%s270 + $0x50] sm:$0xff]
      %v328 = vld [vmem:[%s270 + $0x60] sm:$0xff]
      %v329 = vld [vmem:[%s270 + $0x70] sm:$0xff]
      %v330 = vld [vmem:[%s270 + $0x120] sm:$0xff]
      %v331 = vld [vmem:[%s270 + $0x130] sm:$0xff]
      %v332 = vld [vmem:[%s270 + $0x140] sm:$0xff]
      %v333 = vld [vmem:[%s270 + $0x150] sm:$0xff]
      %v334 = vld [vmem:[%s270 + $0x160] sm:$0xff]
      %v335 = vld [vmem:[%s270 + $0x170] sm:$0xff]
      %v336 = vld [vmem:[%s270 + $0x180] sm:$0xff]
      %v337 = vld [vmem:[%s270 + $0x190] sm:$0xff]
      %v338 = vld [vmem:[%s270 + $0x1] sm:$0xff]
      %v339 = vld [vmem:[%s270 + $0x11] sm:$0xff]
      %v340 = vld [vmem:[%s270 + $0x21] sm:$0xff]
      %v341 = vld [vmem:[%s270 + $0x31] sm:$0xff]
      %v342 = vld [vmem:[%s270 + $0x41] sm:$0xff]
      %v343 = vld [vmem:[%s270 + $0x51] sm:$0xff]
      %v344 = vld [vmem:[%s270 + $0x61] sm:$0xff]
      %v345 = vld [vmem:[%s270 + $0x71] sm:$0xff]
      %v346 = vld [vmem:[%s270 + $0x121] sm:$0xff]
      %v347 = vld [vmem:[%s270 + $0x131] sm:$0xff]
      %v348 = vld [vmem:[%s270 + $0x141] sm:$0xff]
      %v349 = vld [vmem:[%s270 + $0x151] sm:$0xff]
      %v350 = vld [vmem:[%s270 + $0x161] sm:$0xff]
      %v351 = vld [vmem:[%s270 + $0x171] sm:$0xff]
      %v352 = vld [vmem:[%s270 + $0x181] sm:$0xff]
      %v353 = vld [vmem:[%s270 + $0x191] sm:$0xff]
      %v354 = vld [vmem:[%s4] sm:$0xff]
      %v355 = vld [vmem:[%s4 + $0x8] sm:$0xff]
      %v356 = vld [vmem:[%s4 + $0x10] sm:$0xff]
      %v357 = vld [vmem:[%s4 + $0x18] sm:$0xff]
      %v358 = vld [vmem:[%s4 + $0x20] sm:$0xff]
      %v359 = vld [vmem:[%s4 + $0x28] sm:$0xff]
      %v360 = vld [vmem:[%s4 + $0x30] sm:$0xff]
      %v361 = vld [vmem:[%s4 + $0x38] sm:$0xff]
      %v362 = vld [vmem:[%s4 + $0x40] sm:$0xff]
      %v363 = vld [vmem:[%s4 + $0x48] sm:$0xff]
      %v364 = vld [vmem:[%s4 + $0x50] sm:$0xff]
      %v365 = vld [vmem:[%s4 + $0x58] sm:$0xff]
      %v366 = vld [vmem:[%s4 + $0x60] sm:$0xff]
      %v367 = vld [vmem:[%s4 + $0x68] sm:$0xff]
      %v368 = vld [vmem:[%s4 + $0x70] sm:$0xff]
      %v369 = vld [vmem:[%s4 + $0x78] sm:$0xff]
      %s370 = scalar_lea.vmem %s4, 128
      %v371 = vld [vmem:[%s370] sm:$0xff]
      %v372 = vld [vmem:[%s370 + $0x8] sm:$0xff]
      %v373 = vld [vmem:[%s370 + $0x10] sm:$0xff]
      %v374 = vld [vmem:[%s370 + $0x18] sm:$0xff]
      %v375 = vld [vmem:[%s370 + $0x20] sm:$0xff]
      %v376 = vld [vmem:[%s370 + $0x28] sm:$0xff]
      %v377 = vld [vmem:[%s370 + $0x30] sm:$0xff]
      %v378 = vld [vmem:[%s370 + $0x38] sm:$0xff]
      %v379 = vld [vmem:[%s370 + $0x40] sm:$0xff]
      %v380 = vld [vmem:[%s370 + $0x48] sm:$0xff]
      %v381 = vld [vmem:[%s370 + $0x50] sm:$0xff]
      %v382 = vld [vmem:[%s370 + $0x58] sm:$0xff]
      %v383 = vld [vmem:[%s370 + $0x60] sm:$0xff]
      %v384 = vld [vmem:[%s370 + $0x68] sm:$0xff]
      %v385 = vld [vmem:[%s370 + $0x70] sm:$0xff]
      %v386 = vld [vmem:[%s370 + $0x78] sm:$0xff]
      %387 = vmatpush.msra.mxu0 %v386
      %388 = vmatpush.msra.mxu0 %v385
      %389 = vmatpush.msra.mxu0 %v384
      %390 = vmatpush.msra.mxu0 %v383
      %391 = vmatpush.msra.mxu0 %v382
      %392 = vmatpush.msra.mxu0 %v381
      %393 = vmatpush.msra.mxu0 %v380
      %394 = vmatpush.msra.mxu0 %v379
      %395 = vmatpush.msra.mxu0 %v378
      %396 = vmatpush.msra.mxu0 %v377
      %397 = vmatpush.msra.mxu0 %v376
      %398 = vmatpush.msra.mxu0 %v375
      %399 = vmatpush.msra.mxu0 %v374
      %400 = vmatpush.msra.mxu0 %v373
      %401 = vmatpush.msra.mxu0 %v372
      %402 = vmatpush.msra.mxu0 %v371
      %403 = vmatmul.f32.gmra.mxu0 %v338
      %v404 = vpop.f32.mrf.mxu0
      %v405 = vadd.f32 0.0, %v404
      %406 = vmatmul.f32.gmra.mxu0 %v339
      %v407 = vpop.f32.mrf.mxu0
      %v408 = vadd.f32 0.0, %v407
      %409 = vmatmul.f32.gmra.mxu0 %v340
      %v410 = vpop.f32.mrf.mxu0
      %v411 = vadd.f32 0.0, %v410
      %412 = vmatmul.f32.gmra.mxu0 %v341
      %v413 = vpop.f32.mrf.mxu0
      %v414 = vadd.f32 0.0, %v413
      %415 = vmatmul.f32.gmra.mxu0 %v342
      %v416 = vpop.f32.mrf.mxu0
      %v417 = vadd.f32 0.0, %v416
      %418 = vmatmul.f32.gmra.mxu0 %v343
      %v419 = vpop.f32.mrf.mxu0
      %v420 = vadd.f32 0.0, %v419
      %421 = vmatmul.f32.gmra.mxu0 %v344
      %v422 = vpop.f32.mrf.mxu0
      %v423 = vadd.f32 0.0, %v422
      %424 = vmatmul.f32.gmra.mxu0 %v345
      %v425 = vpop.f32.mrf.mxu0
      %v426 = vadd.f32 0.0, %v425
      %427 = vmatmul.f32.gmra.mxu0 %v346
      %v428 = vpop.f32.mrf.mxu0
      %v429 = vadd.f32 0.0, %v428
      %430 = vmatmul.f32.gmra.mxu0 %v347
      %v431 = vpop.f32.mrf.mxu0
      %v432 = vadd.f32 0.0, %v431
      %433 = vmatmul.f32.gmra.mxu0 %v348
      %v434 = vpop.f32.mrf.mxu0
      %v435 = vadd.f32 0.0, %v434
      %436 = vmatmul.f32.gmra.mxu0 %v349
      %v437 = vpop.f32.mrf.mxu0
      %v438 = vadd.f32 0.0, %v437
      %439 = vmatmul.f32.gmra.mxu0 %v350
      %v440 = vpop.f32.mrf.mxu0
      %v441 = vadd.f32 0.0, %v440
      %442 = vmatmul.f32.gmra.mxu0 %v351
      %v443 = vpop.f32.mrf.mxu0
      %v444 = vadd.f32 0.0, %v443
      %445 = vmatmul.f32.gmra.mxu0 %v352
      %v446 = vpop.f32.mrf.mxu0
      %v447 = vadd.f32 0.0, %v446
      %448 = vmatmul.f32.gmra.mxu0 %v353
      %v449 = vpop.f32.mrf.mxu0
      %v450 = vadd.f32 0.0, %v449
      %451 = vdwg.mxu0
      %452 = vmatpush.msra.mxu0 %v369
      %453 = vmatpush.msra.mxu0 %v368
      %454 = vmatpush.msra.mxu0 %v367
      %455 = vmatpush.msra.mxu0 %v366
      %456 = vmatpush.msra.mxu0 %v365
      %457 = vmatpush.msra.mxu0 %v364
      %458 = vmatpush.msra.mxu0 %v363
      %459 = vmatpush.msra.mxu0 %v362
      %460 = vmatpush.msra.mxu0 %v361
      %461 = vmatpush.msra.mxu0 %v360
      %462 = vmatpush.msra.mxu0 %v359
      %463 = vmatpush.msra.mxu0 %v358
      %464 = vmatpush.msra.mxu0 %v357
      %465 = vmatpush.msra.mxu0 %v356
      %466 = vmatpush.msra.mxu0 %v355
      %467 = vmatpush.msra.mxu0 %v354
      %468 = vmatmul.f32.gmra.mxu0 %v322
      %v469 = vpop.f32.mrf.mxu0
      %v470 = vadd.f32 %v405, %v469
      %471 = vmatmul.f32.gmra.mxu0 %v323
      %v472 = vpop.f32.mrf.mxu0
      %v473 = vadd.f32 %v408, %v472
      %474 = vmatmul.f32.gmra.mxu0 %v324
      %v475 = vpop.f32.mrf.mxu0
      %v476 = vadd.f32 %v411, %v475
      %477 = vmatmul.f32.gmra.mxu0 %v325
      %v478 = vpop.f32.mrf.mxu0
      %v479 = vadd.f32 %v414, %v478
      %480 = vmatmul.f32.gmra.mxu0 %v326
      %v481 = vpop.f32.mrf.mxu0
      %v482 = vadd.f32 %v417, %v481
      %483 = vmatmul.f32.gmra.mxu0 %v327
      %v484 = vpop.f32.mrf.mxu0
      %v485 = vadd.f32 %v420, %v484
      %486 = vmatmul.f32.gmra.mxu0 %v328
      %v487 = vpop.f32.mrf.mxu0
      %v488 = vadd.f32 %v423, %v487
      %489 = vmatmul.f32.gmra.mxu0 %v329
      %v490 = vpop.f32.mrf.mxu0
      %v491 = vadd.f32 %v426, %v490
      %492 = vmatmul.f32.gmra.mxu0 %v330
      %v493 = vpop.f32.mrf.mxu0
      %v494 = vadd.f32 %v429, %v493
      %495 = vmatmul.f32.gmra.mxu0 %v331
      %v496 = vpop.f32.mrf.mxu0
      %v497 = vadd.f32 %v432, %v496
      %498 = vmatmul.f32.gmra.mxu0 %v332
      %v499 = vpop.f32.mrf.mxu0
      %v500 = vadd.f32 %v435, %v499
      %501 = vmatmul.f32.gmra.mxu0 %v333
      %v502 = vpop.f32.mrf.mxu0
      %v503 = vadd.f32 %v438, %v502
      %504 = vmatmul.f32.gmra.mxu0 %v334
      %v505 = vpop.f32.mrf.mxu0
      %v506 = vadd.f32 %v441, %v505
      %507 = vmatmul.f32.gmra.mxu0 %v335
      %v508 = vpop.f32.mrf.mxu0
      %v509 = vadd.f32 %v444, %v508
      %510 = vmatmul.f32.gmra.mxu0 %v336
      %v511 = vpop.f32.mrf.mxu0
      %v512 = vadd.f32 %v447, %v511
      %513 = vmatmul.f32.gmra.mxu0 %v337
      %v514 = vpop.f32.mrf.mxu0
      %v515 = vadd.f32 %v450, %v514
      %516 = vdwg.mxu0
      %s517 = scalar_lea.vmem %s270, 144
      %v518 = vld [vmem:[%s517] sm:$0xff]
      %v519 = vld [vmem:[%s517 + $0x10] sm:$0xff]
      %v520 = vld [vmem:[%s517 + $0x20] sm:$0xff]
      %v521 = vld [vmem:[%s517 + $0x30] sm:$0xff]
      %v522 = vld [vmem:[%s517 + $0x40] sm:$0xff]
      %v523 = vld [vmem:[%s517 + $0x50] sm:$0xff]
      %v524 = vld [vmem:[%s517 + $0x60] sm:$0xff]
      %v525 = vld [vmem:[%s517 + $0x70] sm:$0xff]
      %v526 = vld [vmem:[%s517 + $0x120] sm:$0xff]
      %v527 = vld [vmem:[%s517 + $0x130] sm:$0xff]
      %v528 = vld [vmem:[%s517 + $0x140] sm:$0xff]
      %v529 = vld [vmem:[%s517 + $0x150] sm:$0xff]
      %v530 = vld [vmem:[%s517 + $0x160] sm:$0xff]
      %v531 = vld [vmem:[%s517 + $0x170] sm:$0xff]
      %v532 = vld [vmem:[%s517 + $0x180] sm:$0xff]
      %v533 = vld [vmem:[%s517 + $0x190] sm:$0xff]
      %v534 = vld [vmem:[%s517 + $0x1] sm:$0xff]
      %v535 = vld [vmem:[%s517 + $0x11] sm:$0xff]
      %v536 = vld [vmem:[%s517 + $0x21] sm:$0xff]
      %v537 = vld [vmem:[%s517 + $0x31] sm:$0xff]
      %v538 = vld [vmem:[%s517 + $0x41] sm:$0xff]
      %v539 = vld [vmem:[%s517 + $0x51] sm:$0xff]
      %v540 = vld [vmem:[%s517 + $0x61] sm:$0xff]
      %v541 = vld [vmem:[%s517 + $0x71] sm:$0xff]
      %v542 = vld [vmem:[%s517 + $0x121] sm:$0xff]
      %v543 = vld [vmem:[%s517 + $0x131] sm:$0xff]
      %v544 = vld [vmem:[%s517 + $0x141] sm:$0xff]
      %v545 = vld [vmem:[%s517 + $0x151] sm:$0xff]
      %v546 = vld [vmem:[%s517 + $0x161] sm:$0xff]
      %v547 = vld [vmem:[%s517 + $0x171] sm:$0xff]
      %v548 = vld [vmem:[%s517 + $0x181] sm:$0xff]
      %v549 = vld [vmem:[%s517 + $0x191] sm:$0xff]
      %s550 = scalar_lea.vmem %s4, 256
      %v551 = vld [vmem:[%s550] sm:$0xff]
      %v552 = vld [vmem:[%s550 + $0x8] sm:$0xff]
      %v553 = vld [vmem:[%s550 + $0x10] sm:$0xff]
      %v554 = vld [vmem:[%s550 + $0x18] sm:$0xff]
      %v555 = vld [vmem:[%s550 + $0x20] sm:$0xff]
      %v556 = vld [vmem:[%s550 + $0x28] sm:$0xff]
      %v557 = vld [vmem:[%s550 + $0x30] sm:$0xff]
      %v558 = vld [vmem:[%s550 + $0x38] sm:$0xff]
      %v559 = vld [vmem:[%s550 + $0x40] sm:$0xff]
      %v560 = vld [vmem:[%s550 + $0x48] sm:$0xff]
      %v561 = vld [vmem:[%s550 + $0x50] sm:$0xff]
      %v562 = vld [vmem:[%s550 + $0x58] sm:$0xff]
      %v563 = vld [vmem:[%s550 + $0x60] sm:$0xff]
      %v564 = vld [vmem:[%s550 + $0x68] sm:$0xff]
      %v565 = vld [vmem:[%s550 + $0x70] sm:$0xff]
      %v566 = vld [vmem:[%s550 + $0x78] sm:$0xff]
      %s567 = scalar_lea.vmem %s4, 384
      %v568 = vld [vmem:[%s567] sm:$0xff]
      %v569 = vld [vmem:[%s567 + $0x8] sm:$0xff]
      %v570 = vld [vmem:[%s567 + $0x10] sm:$0xff]
      %v571 = vld [vmem:[%s567 + $0x18] sm:$0xff]
      %v572 = vld [vmem:[%s567 + $0x20] sm:$0xff]
      %v573 = vld [vmem:[%s567 + $0x28] sm:$0xff]
      %v574 = vld [vmem:[%s567 + $0x30] sm:$0xff]
      %v575 = vld [vmem:[%s567 + $0x38] sm:$0xff]
      %v576 = vld [vmem:[%s567 + $0x40] sm:$0xff]
      %v577 = vld [vmem:[%s567 + $0x48] sm:$0xff]
      %v578 = vld [vmem:[%s567 + $0x50] sm:$0xff]
      %v579 = vld [vmem:[%s567 + $0x58] sm:$0xff]
      %v580 = vld [vmem:[%s567 + $0x60] sm:$0xff]
      %v581 = vld [vmem:[%s567 + $0x68] sm:$0xff]
      %v582 = vld [vmem:[%s567 + $0x70] sm:$0xff]
      %v583 = vld [vmem:[%s567 + $0x78] sm:$0xff]
      %584 = vmatpush.msra.mxu0 %v583
      %585 = vmatpush.msra.mxu0 %v582
      %586 = vmatpush.msra.mxu0 %v581
      %587 = vmatpush.msra.mxu0 %v580
      %588 = vmatpush.msra.mxu0 %v579
      %589 = vmatpush.msra.mxu0 %v578
      %590 = vmatpush.msra.mxu0 %v577
      %591 = vmatpush.msra.mxu0 %v576
      %592 = vmatpush.msra.mxu0 %v575
      %593 = vmatpush.msra.mxu0 %v574
      %594 = vmatpush.msra.mxu0 %v573
      %595 = vmatpush.msra.mxu0 %v572
      %596 = vmatpush.msra.mxu0 %v571
      %597 = vmatpush.msra.mxu0 %v570
      %598 = vmatpush.msra.mxu0 %v569
      %599 = vmatpush.msra.mxu0 %v568
      %600 = vmatmul.f32.gmra.mxu0 %v534
      %v601 = vpop.f32.mrf.mxu0
      %v602 = vadd.f32 0.0, %v601
      %603 = vmatmul.f32.gmra.mxu0 %v535
      %v604 = vpop.f32.mrf.mxu0
      %v605 = vadd.f32 0.0, %v604
      %606 = vmatmul.f32.gmra.mxu0 %v536
      %v607 = vpop.f32.mrf.mxu0
      %v608 = vadd.f32 0.0, %v607
      %609 = vmatmul.f32.gmra.mxu0 %v537
      %v610 = vpop.f32.mrf.mxu0
      %v611 = vadd.f32 0.0, %v610
      %612 = vmatmul.f32.gmra.mxu0 %v538
      %v613 = vpop.f32.mrf.mxu0
      %v614 = vadd.f32 0.0, %v613
      %615 = vmatmul.f32.gmra.mxu0 %v539
      %v616 = vpop.f32.mrf.mxu0
      %v617 = vadd.f32 0.0, %v616
      %618 = vmatmul.f32.gmra.mxu0 %v540
      %v619 = vpop.f32.mrf.mxu0
      %v620 = vadd.f32 0.0, %v619
      %621 = vmatmul.f32.gmra.mxu0 %v541
      %v622 = vpop.f32.mrf.mxu0
      %v623 = vadd.f32 0.0, %v622
      %624 = vmatmul.f32.gmra.mxu0 %v542
      %v625 = vpop.f32.mrf.mxu0
      %v626 = vadd.f32 0.0, %v625
      %627 = vmatmul.f32.gmra.mxu0 %v543
      %v628 = vpop.f32.mrf.mxu0
      %v629 = vadd.f32 0.0, %v628
      %630 = vmatmul.f32.gmra.mxu0 %v544
      %v631 = vpop.f32.mrf.mxu0
      %v632 = vadd.f32 0.0, %v631
      %633 = vmatmul.f32.gmra.mxu0 %v545
      %v634 = vpop.f32.mrf.mxu0
      %v635 = vadd.f32 0.0, %v634
      %636 = vmatmul.f32.gmra.mxu0 %v546
      %v637 = vpop.f32.mrf.mxu0
      %v638 = vadd.f32 0.0, %v637
      %639 = vmatmul.f32.gmra.mxu0 %v547
      %v640 = vpop.f32.mrf.mxu0
      %v641 = vadd.f32 0.0, %v640
      %642 = vmatmul.f32.gmra.mxu0 %v548
      %v643 = vpop.f32.mrf.mxu0
      %v644 = vadd.f32 0.0, %v643
      %645 = vmatmul.f32.gmra.mxu0 %v549
      %v646 = vpop.f32.mrf.mxu0
      %v647 = vadd.f32 0.0, %v646
      %648 = vdwg.mxu0
      %649 = vmatpush.msra.mxu0 %v566
      %650 = vmatpush.msra.mxu0 %v565
      %651 = vmatpush.msra.mxu0 %v564
      %652 = vmatpush.msra.mxu0 %v563
      %653 = vmatpush.msra.mxu0 %v562
      %654 = vmatpush.msra.mxu0 %v561
      %655 = vmatpush.msra.mxu0 %v560
      %656 = vmatpush.msra.mxu0 %v559
      %657 = vmatpush.msra.mxu0 %v558
      %658 = vmatpush.msra.mxu0 %v557
      %659 = vmatpush.msra.mxu0 %v556
      %660 = vmatpush.msra.mxu0 %v555
      %661 = vmatpush.msra.mxu0 %v554
      %662 = vmatpush.msra.mxu0 %v553
      %663 = vmatpush.msra.mxu0 %v552
      %664 = vmatpush.msra.mxu0 %v551
      %665 = vmatmul.f32.gmra.mxu0 %v518
      %v666 = vpop.f32.mrf.mxu0
      %v667 = vadd.f32 %v602, %v666
      %668 = vmatmul.f32.gmra.mxu0 %v519
      %v669 = vpop.f32.mrf.mxu0
      %v670 = vadd.f32 %v605, %v669
      %671 = vmatmul.f32.gmra.mxu0 %v520
      %v672 = vpop.f32.mrf.mxu0
      %v673 = vadd.f32 %v608, %v672
      %674 = vmatmul.f32.gmra.mxu0 %v521
      %v675 = vpop.f32.mrf.mxu0
      %v676 = vadd.f32 %v611, %v675
      %677 = vmatmul.f32.gmra.mxu0 %v522
      %v678 = vpop.f32.mrf.mxu0
      %v679 = vadd.f32 %v614, %v678
      %680 = vmatmul.f32.gmra.mxu0 %v523
      %v681 = vpop.f32.mrf.mxu0
      %v682 = vadd.f32 %v617, %v681
      %683 = vmatmul.f32.gmra.mxu0 %v524
      %v684 = vpop.f32.mrf.mxu0
      %v685 = vadd.f32 %v620, %v684
      %686 = vmatmul.f32.gmra.mxu0 %v525
      %v687 = vpop.f32.mrf.mxu0
      %v688 = vadd.f32 %v623, %v687
      %689 = vmatmul.f32.gmra.mxu0 %v526
      %v690 = vpop.f32.mrf.mxu0
      %v691 = vadd.f32 %v626, %v690
      %692 = vmatmul.f32.gmra.mxu0 %v527
      %v693 = vpop.f32.mrf.mxu0
      %v694 = vadd.f32 %v629, %v693
      %695 = vmatmul.f32.gmra.mxu0 %v528
      %v696 = vpop.f32.mrf.mxu0
      %v697 = vadd.f32 %v632, %v696
      %698 = vmatmul.f32.gmra.mxu0 %v529
      %v699 = vpop.f32.mrf.mxu0
      %v700 = vadd.f32 %v635, %v699
      %701 = vmatmul.f32.gmra.mxu0 %v530
      %v702 = vpop.f32.mrf.mxu0
      %v703 = vadd.f32 %v638, %v702
      %704 = vmatmul.f32.gmra.mxu0 %v531
      %v705 = vpop.f32.mrf.mxu0
      %v706 = vadd.f32 %v641, %v705
      %707 = vmatmul.f32.gmra.mxu0 %v532
      %v708 = vpop.f32.mrf.mxu0
      %v709 = vadd.f32 %v644, %v708
      %710 = vmatmul.f32.gmra.mxu0 %v533
      %v711 = vpop.f32.mrf.mxu0
      %v712 = vadd.f32 %v647, %v711
      %713 = vdwg.mxu0
      %v714 = vadd.f32 %v470, %v667
      %v715 = vadd.f32 %v473, %v670
      %v716 = vadd.f32 %v476, %v673
      %v717 = vadd.f32 %v479, %v676
      %v718 = vadd.f32 %v482, %v679
      %v719 = vadd.f32 %v485, %v682
      %v720 = vadd.f32 %v488, %v685
      %v721 = vadd.f32 %v491, %v688
      %v722 = vadd.f32 %v494, %v691
      %v723 = vadd.f32 %v497, %v694
      %v724 = vadd.f32 %v500, %v697
      %v725 = vadd.f32 %v503, %v700
      %v726 = vadd.f32 %v506, %v703
      %v727 = vadd.f32 %v509, %v706
      %v728 = vadd.f32 %v512, %v709
      %v729 = vadd.f32 %v515, %v712
      %s730 = scalar_lea.vmem %s270, 16
      %v731 = vld [vmem:[%s730] sm:$0xff]
      %v732 = vld [vmem:[%s730 + $0x10] sm:$0xff]
      %v733 = vld [vmem:[%s730 + $0x20] sm:$0xff]
      %v734 = vld [vmem:[%s730 + $0x30] sm:$0xff]
      %v735 = vld [vmem:[%s730 + $0x40] sm:$0xff]
      %v736 = vld [vmem:[%s730 + $0x50] sm:$0xff]
      %v737 = vld [vmem:[%s730 + $0x60] sm:$0xff]
      %v738 = vld [vmem:[%s730 + $0x70] sm:$0xff]
      %v739 = vld [vmem:[%s730 + $0x120] sm:$0xff]
      %v740 = vld [vmem:[%s730 + $0x130] sm:$0xff]
      %v741 = vld [vmem:[%s730 + $0x140] sm:$0xff]
      %v742 = vld [vmem:[%s730 + $0x150] sm:$0xff]
      %v743 = vld [vmem:[%s730 + $0x160] sm:$0xff]
      %v744 = vld [vmem:[%s730 + $0x170] sm:$0xff]
      %v745 = vld [vmem:[%s730 + $0x180] sm:$0xff]
      %v746 = vld [vmem:[%s730 + $0x190] sm:$0xff]
      %v747 = vld [vmem:[%s730 + $0x1] sm:$0xff]
      %v748 = vld [vmem:[%s730 + $0x11] sm:$0xff]
      %v749 = vld [vmem:[%s730 + $0x21] sm:$0xff]
      %v750 = vld [vmem:[%s730 + $0x31] sm:$0xff]
      %v751 = vld [vmem:[%s730 + $0x41] sm:$0xff]
      %v752 = vld [vmem:[%s730 + $0x51] sm:$0xff]
      %v753 = vld [vmem:[%s730 + $0x61] sm:$0xff]
      %v754 = vld [vmem:[%s730 + $0x71] sm:$0xff]
      %v755 = vld [vmem:[%s730 + $0x121] sm:$0xff]
      %v756 = vld [vmem:[%s730 + $0x131] sm:$0xff]
      %v757 = vld [vmem:[%s730 + $0x141] sm:$0xff]
      %v758 = vld [vmem:[%s730 + $0x151] sm:$0xff]
      %v759 = vld [vmem:[%s730 + $0x161] sm:$0xff]
      %v760 = vld [vmem:[%s730 + $0x171] sm:$0xff]
      %v761 = vld [vmem:[%s730 + $0x181] sm:$0xff]
      %v762 = vld [vmem:[%s730 + $0x191] sm:$0xff]
      %s763 = scalar_lea.vmem %s4, 512
      %v764 = vld [vmem:[%s763] sm:$0xff]
      %v765 = vld [vmem:[%s763 + $0x8] sm:$0xff]
      %v766 = vld [vmem:[%s763 + $0x10] sm:$0xff]
      %v767 = vld [vmem:[%s763 + $0x18] sm:$0xff]
      %v768 = vld [vmem:[%s763 + $0x20] sm:$0xff]
      %v769 = vld [vmem:[%s763 + $0x28] sm:$0xff]
      %v770 = vld [vmem:[%s763 + $0x30] sm:$0xff]
      %v771 = vld [vmem:[%s763 + $0x38] sm:$0xff]
      %v772 = vld [vmem:[%s763 + $0x40] sm:$0xff]
      %v773 = vld [vmem:[%s763 + $0x48] sm:$0xff]
      %v774 = vld [vmem:[%s763 + $0x50] sm:$0xff]
      %v775 = vld [vmem:[%s763 + $0x58] sm:$0xff]
      %v776 = vld [vmem:[%s763 + $0x60] sm:$0xff]
      %v777 = vld [vmem:[%s763 + $0x68] sm:$0xff]
      %v778 = vld [vmem:[%s763 + $0x70] sm:$0xff]
      %v779 = vld [vmem:[%s763 + $0x78] sm:$0xff]
      %s780 = scalar_lea.vmem %s4, 640
      %v781 = vld [vmem:[%s780] sm:$0xff]
      %v782 = vld [vmem:[%s780 + $0x8] sm:$0xff]
      %v783 = vld [vmem:[%s780 + $0x10] sm:$0xff]
      %v784 = vld [vmem:[%s780 + $0x18] sm:$0xff]
      %v785 = vld [vmem:[%s780 + $0x20] sm:$0xff]
      %v786 = vld [vmem:[%s780 + $0x28] sm:$0xff]
      %v787 = vld [vmem:[%s780 + $0x30] sm:$0xff]
      %v788 = vld [vmem:[%s780 + $0x38] sm:$0xff]
      %v789 = vld [vmem:[%s780 + $0x40] sm:$0xff]
      %v790 = vld [vmem:[%s780 + $0x48] sm:$0xff]
      %v791 = vld [vmem:[%s780 + $0x50] sm:$0xff]
      %v792 = vld [vmem:[%s780 + $0x58] sm:$0xff]
      %v793 = vld [vmem:[%s780 + $0x60] sm:$0xff]
      %v794 = vld [vmem:[%s780 + $0x68] sm:$0xff]
      %v795 = vld [vmem:[%s780 + $0x70] sm:$0xff]
      %v796 = vld [vmem:[%s780 + $0x78] sm:$0xff]
      %797 = vmatpush.msra.mxu0 %v796
      %798 = vmatpush.msra.mxu0 %v795
      %799 = vmatpush.msra.mxu0 %v794
      %800 = vmatpush.msra.mxu0 %v793
      %801 = vmatpush.msra.mxu0 %v792
      %802 = vmatpush.msra.mxu0 %v791
      %803 = vmatpush.msra.mxu0 %v790
      %804 = vmatpush.msra.mxu0 %v789
      %805 = vmatpush.msra.mxu0 %v788
      %806 = vmatpush.msra.mxu0 %v787
      %807 = vmatpush.msra.mxu0 %v786
      %808 = vmatpush.msra.mxu0 %v785
      %809 = vmatpush.msra.mxu0 %v784
      %810 = vmatpush.msra.mxu0 %v783
      %811 = vmatpush.msra.mxu0 %v782
      %812 = vmatpush.msra.mxu0 %v781
      %813 = vmatmul.f32.gmra.mxu0 %v747
      %v814 = vpop.f32.mrf.mxu0
      %v815 = vadd.f32 0.0, %v814
      %816 = vmatmul.f32.gmra.mxu0 %v748
      %v817 = vpop.f32.mrf.mxu0
      %v818 = vadd.f32 0.0, %v817
      %819 = vmatmul.f32.gmra.mxu0 %v749
      %v820 = vpop.f32.mrf.mxu0
      %v821 = vadd.f32 0.0, %v820
      %822 = vmatmul.f32.gmra.mxu0 %v750
      %v823 = vpop.f32.mrf.mxu0
      %v824 = vadd.f32 0.0, %v823
      %825 = vmatmul.f32.gmra.mxu0 %v751
      %v826 = vpop.f32.mrf.mxu0
      %v827 = vadd.f32 0.0, %v826
      %828 = vmatmul.f32.gmra.mxu0 %v752
      %v829 = vpop.f32.mrf.mxu0
      %v830 = vadd.f32 0.0, %v829
      %831 = vmatmul.f32.gmra.mxu0 %v753
      %v832 = vpop.f32.mrf.mxu0
      %v833 = vadd.f32 0.0, %v832
      %834 = vmatmul.f32.gmra.mxu0 %v754
      %v835 = vpop.f32.mrf.mxu0
      %v836 = vadd.f32 0.0, %v835
      %837 = vmatmul.f32.gmra.mxu0 %v755
      %v838 = vpop.f32.mrf.mxu0
      %v839 = vadd.f32 0.0, %v838
      %840 = vmatmul.f32.gmra.mxu0 %v756
      %v841 = vpop.f32.mrf.mxu0
      %v842 = vadd.f32 0.0, %v841
      %843 = vmatmul.f32.gmra.mxu0 %v757
      %v844 = vpop.f32.mrf.mxu0
      %v845 = vadd.f32 0.0, %v844
      %846 = vmatmul.f32.gmra.mxu0 %v758
      %v847 = vpop.f32.mrf.mxu0
      %v848 = vadd.f32 0.0, %v847
      %849 = vmatmul.f32.gmra.mxu0 %v759
      %v850 = vpop.f32.mrf.mxu0
      %v851 = vadd.f32 0.0, %v850
      %852 = vmatmul.f32.gmra.mxu0 %v760
      %v853 = vpop.f32.mrf.mxu0
      %v854 = vadd.f32 0.0, %v853
      %855 = vmatmul.f32.gmra.mxu0 %v761
      %v856 = vpop.f32.mrf.mxu0
      %v857 = vadd.f32 0.0, %v856
      %858 = vmatmul.f32.gmra.mxu0 %v762
      %v859 = vpop.f32.mrf.mxu0
      %v860 = vadd.f32 0.0, %v859
      %861 = vdwg.mxu0
      %862 = vmatpush.msra.mxu0 %v779
      %863 = vmatpush.msra.mxu0 %v778
      %864 = vmatpush.msra.mxu0 %v777
      %865 = vmatpush.msra.mxu0 %v776
      %866 = vmatpush.msra.mxu0 %v775
      %867 = vmatpush.msra.mxu0 %v774
      %868 = vmatpush.msra.mxu0 %v773
      %869 = vmatpush.msra.mxu0 %v772
      %870 = vmatpush.msra.mxu0 %v771
      %871 = vmatpush.msra.mxu0 %v770
      %872 = vmatpush.msra.mxu0 %v769
      %873 = vmatpush.msra.mxu0 %v768
      %874 = vmatpush.msra.mxu0 %v767
      %875 = vmatpush.msra.mxu0 %v766
      %876 = vmatpush.msra.mxu0 %v765
      %877 = vmatpush.msra.mxu0 %v764
      %878 = vmatmul.f32.gmra.mxu0 %v731
      %v879 = vpop.f32.mrf.mxu0
      %v880 = vadd.f32 %v815, %v879
      %881 = vmatmul.f32.gmra.mxu0 %v732
      %v882 = vpop.f32.mrf.mxu0
      %v883 = vadd.f32 %v818, %v882
      %884 = vmatmul.f32.gmra.mxu0 %v733
      %v885 = vpop.f32.mrf.mxu0
      %v886 = vadd.f32 %v821, %v885
      %887 = vmatmul.f32.gmra.mxu0 %v734
      %v888 = vpop.f32.mrf.mxu0
      %v889 = vadd.f32 %v824, %v888
      %890 = vmatmul.f32.gmra.mxu0 %v735
      %v891 = vpop.f32.mrf.mxu0
      %v892 = vadd.f32 %v827, %v891
      %893 = vmatmul.f32.gmra.mxu0 %v736
      %v894 = vpop.f32.mrf.mxu0
      %v895 = vadd.f32 %v830, %v894
      %896 = vmatmul.f32.gmra.mxu0 %v737
      %v897 = vpop.f32.mrf.mxu0
      %v898 = vadd.f32 %v833, %v897
      %899 = vmatmul.f32.gmra.mxu0 %v738
      %v900 = vpop.f32.mrf.mxu0
      %v901 = vadd.f32 %v836, %v900
      %902 = vmatmul.f32.gmra.mxu0 %v739
      %v903 = vpop.f32.mrf.mxu0
      %v904 = vadd.f32 %v839, %v903
      %905 = vmatmul.f32.gmra.mxu0 %v740
      %v906 = vpop.f32.mrf.mxu0
      %v907 = vadd.f32 %v842, %v906
      %908 = vmatmul.f32.gmra.mxu0 %v741
      %v909 = vpop.f32.mrf.mxu0
      %v910 = vadd.f32 %v845, %v909
      %911 = vmatmul.f32.gmra.mxu0 %v742
      %v912 = vpop.f32.mrf.mxu0
      %v913 = vadd.f32 %v848, %v912
      %914 = vmatmul.f32.gmra.mxu0 %v743
      %v915 = vpop.f32.mrf.mxu0
      %v916 = vadd.f32 %v851, %v915
      %917 = vmatmul.f32.gmra.mxu0 %v744
      %v918 = vpop.f32.mrf.mxu0
      %v919 = vadd.f32 %v854, %v918
      %920 = vmatmul.f32.gmra.mxu0 %v745
      %v921 = vpop.f32.mrf.mxu0
      %v922 = vadd.f32 %v857, %v921
      %923 = vmatmul.f32.gmra.mxu0 %v746
      %v924 = vpop.f32.mrf.mxu0
      %v925 = vadd.f32 %v860, %v924
      %926 = vdwg.mxu0
      %v927 = vadd.f32 %v714, %v880
      %v928 = vadd.f32 %v715, %v883
      %v929 = vadd.f32 %v716, %v886
      %v930 = vadd.f32 %v717, %v889
      %v931 = vadd.f32 %v718, %v892
      %v932 = vadd.f32 %v719, %v895
      %v933 = vadd.f32 %v720, %v898
      %v934 = vadd.f32 %v721, %v901
      %v935 = vadd.f32 %v722, %v904
      %v936 = vadd.f32 %v723, %v907
      %v937 = vadd.f32 %v724, %v910
      %v938 = vadd.f32 %v725, %v913
      %v939 = vadd.f32 %v726, %v916
      %v940 = vadd.f32 %v727, %v919
      %v941 = vadd.f32 %v728, %v922
      %v942 = vadd.f32 %v729, %v925
      %v943 = vld [vmem:[%s5] sm:$0x1]
      %v945 = vperm.slane %v943, 0
      %v947 = vadd.f32 %v927, %v945
      %v948 = vadd.f32 %v928, %v945
      %v949 = vadd.f32 %v929, %v945
      %v950 = vadd.f32 %v930, %v945
      %v951 = vadd.f32 %v931, %v945
      %v952 = vadd.f32 %v932, %v945
      %v953 = vadd.f32 %v933, %v945
      %v954 = vadd.f32 %v934, %v945
      %v955 = vadd.f32 %v935, %v945
      %v956 = vadd.f32 %v936, %v945
      %v957 = vadd.f32 %v937, %v945
      %v958 = vadd.f32 %v938, %v945
      %v959 = vadd.f32 %v939, %v945
      %v960 = vadd.f32 %v940, %v945
      %v961 = vadd.f32 %v941, %v945
      %v962 = vadd.f32 %v942, %v945
      %v964 = vrot.slane %v320, 1
      %vm982 = vcmask 1040384
      %v983 = vrot.slane %v947, 7
      %v984 = vrot.slane %v948, 7
      %v985 = vsel %vm982, %v983, %v984
      %v986 = vrot.slane %v949, 7
      %v987 = vsel %vm982, %v984, %v986
      %v988 = vrot.slane %v950, 7
      %v989 = vsel %vm982, %v986, %v988
      %v990 = vrot.slane %v951, 7
      %v991 = vsel %vm982, %v988, %v990
      %v992 = vrot.slane %v952, 7
      %v993 = vsel %vm982, %v990, %v992
      %v994 = vrot.slane %v953, 7
      %v995 = vsel %vm982, %v992, %v994
      %v996 = vrot.slane %v954, 7
      %v997 = vsel %vm982, %v994, %v996
      %v998 = vrot.slane %v955, 7
      %v999 = vrot.slane %v956, 7
      %v1000 = vsel %vm982, %v998, %v999
      %v1001 = vrot.slane %v957, 7
      %v1002 = vsel %vm982, %v999, %v1001
      %v1003 = vrot.slane %v958, 7
      %v1004 = vsel %vm982, %v1001, %v1003
      %v1005 = vrot.slane %v959, 7
      %v1006 = vsel %vm982, %v1003, %v1005
      %v1007 = vrot.slane %v960, 7
      %v1008 = vsel %vm982, %v1005, %v1007
      %v1009 = vrot.slane %v961, 7
      %v1010 = vsel %vm982, %v1007, %v1009
      %v1011 = vrot.slane %v962, 7
      %v1012 = vsel %vm982, %v1009, %v1011
      %v1031 = vsel %vm982, %v320, %v983
      %v1032 = vsel %vm982, %v964, %v998
      %1033 = vst [vmem:[%s277] sm:$0xff] %v1031
      %1034 = vst [vmem:[%s277 + $0x8] sm:$0xff] %v985
      %1035 = vst [vmem:[%s277 + $0x10] sm:$0xff] %v987
      %1036 = vst [vmem:[%s277 + $0x18] sm:$0xff] %v989
      %1037 = vst [vmem:[%s277 + $0x20] sm:$0xff] %v991
      %1038 = vst [vmem:[%s277 + $0x28] sm:$0xff] %v993
      %1039 = vst [vmem:[%s277 + $0x30] sm:$0xff] %v995
      %1040 = vst [vmem:[%s277 + $0x38] sm:$0xff] %v997
      %1041 = vst [vmem:[%s277 + $0x40] sm:$0x1] %v996
      %1042 = vst [vmem:[%s277 + $0x48] sm:$0xff] %v1032
      %1043 = vst [vmem:[%s277 + $0x50] sm:$0xff] %v1000
      %1044 = vst [vmem:[%s277 + $0x58] sm:$0xff] %v1002
      %1045 = vst [vmem:[%s277 + $0x60] sm:$0xff] %v1004
      %1046 = vst [vmem:[%s277 + $0x68] sm:$0xff] %v1006
      %1047 = vst [vmem:[%s277 + $0x70] sm:$0xff] %v1008
      %1048 = vst [vmem:[%s277 + $0x78] sm:$0xff] %v1010
      %1049 = vst [vmem:[%s277 + $0x80] sm:$0xff] %v1012
      %1050 = vst [vmem:[%s277 + $0x88] sm:$0x1] %v1011
      %s1051 = smul.u32 2, %s17
      %p1052 = scmp.lt.s32.totalorder %s1051, 7
      %s1053 = scalar_select %p1052, %s1051, 7
      %s1054 = smul.addr %s1053, 9
      %s1055 = smul.addr %s1054, 8
      %s1056 = scalar_lea.vmem %s6, %s1055
      // Predicated region
      $region45: #{tpu_custom_call.1} parent=43 // pred_check
        %p1057 = pneg %p171
      $region46: #{tpu_custom_call.1} parent=43 // pred_check_branch
        %1059 = sbr.rel (%p1057) target = $region48
      $region47: #{tpu_custom_call.1} parent=43 // pred_region
        %s1060 = smul.u32 2, %s17
      $region48: #{tpu_custom_call.1} parent=43 // pred_fallthru
        _
    $region44: #{tpu_custom_call.1} parent=5 // pred_fallthru
      _
    %p1061 = scmp.le.s32.totalorder 2, %s12
    // Predicated region
    $region49: #{tpu_custom_call.1} parent=5 // pred_check
      %p1062 = pneg %p1061
    $region50: #{tpu_custom_call.1} parent=5 // pred_check_branch
      %1064 = sbr.rel (%p1062) target = $region52
    $region51: #{tpu_custom_call.1} parent=5 // pred_region
      %s1065 = ssub.s32 %s12, 2
      // Predicated region
      $region53: #{tpu_custom_call.1} parent=51 // pred_check
        %p1066 = pneg %p177
      $region54: #{tpu_custom_call.1} parent=51 // pred_check_branch
        %1068 = sbr.rel (%p1066) target = $region56
      $region55: #{tpu_custom_call.1} parent=51 // pred_region
        %s1069 = smul.u32 2, %s18
        %p1070 = scmp.lt.s32.totalorder %s1069, 7
        %s1071 = scalar_select %p1070, %s1069, 7
        %s1072 = smul.addr %s1071, 9
        %s1073 = smul.addr %s1072, 8
        %s1074 = scalar_lea.vmem %s6, %s1073
      $region56: #{tpu_custom_call.1} parent=51 // pred_fallthru
        _
    $region52: #{tpu_custom_call.1} parent=5 // pred_fallthru
      _
  $region6: #{tpu_custom_call.1} parent=0 // loop_footer
    %s16 = sadd.s32 1, %s12
  $region7: #{tpu_custom_call.1} parent=0 // loop_footer_branch
    %11 = sbr.rel target = $region3
  $region8: #{tpu_custom_call.1} parent=0 // loop_exit
    _

</llo_original>
